<compile_context>
chip_gen: v6e
topology: v6e:2x2x1
jax: 0.10.0
libtpu: 0.0.40
codegen_flags: <defaults>
</compile_context>

<pallas_src>
import functools

import jax
import jax.numpy as jnp
from jax.experimental import pallas as pl
from jax.experimental.pallas import tpu as pltpu


def _round_up(x: int, m: int) -> int:
    return ((x + m - 1) // m) * m


# ----------------------------------------------------------------------------
# Kernel
# ----------------------------------------------------------------------------
def _mc_dropout_kernel(seed_ref,            # scalar-prefetch seed (SMEM int32[1])
                       x_ref,               # (in_dim, tm)
                       w1_ref, b1_ref,      # (h1, in_dim), (h1, 1)
                       w2_ref, b2_ref,      # (h2, h1),     (h2, 1)
                       w3_ref, b3_ref,      # (h3, h2),     (h3, 1)
                       w4t_ref, b4_ref,     # (h3, 1),      (1, 1)
                       out_ref,             # (1, 1, tm)
                       *, dropout_p: float, training: bool):
    """One (row-block, MC-sample) step of the fused MLP in [features, rows] layout."""
    f32 = jnp.float32
    in_dim, tm = x_ref.shape
    h1_dim = w1_ref.shape[0]
    h2_dim = w2_ref.shape[0]
    h3_dim = w3_ref.shape[0]

    use_dropout = training and dropout_p > 0.0
    if use_dropout:
        # ---- One counter-hash over the widest activation supplies all three
        #      dropout masks from disjoint 16-bit fields of each hash word.
        #      Counter = global (sample, block, row, feature) index, so every
        #      element of every MC sample gets an independent decision. ----
        thresh = jnp.uint32(min(int(round(dropout_p * 65536.0)), 65535))
        seed_u = seed_ref[0].astype(jnp.uint32)
        gstep = pl.program_id(1) * pl.num_programs(0) + pl.program_id(0)
        lane = jax.lax.broadcasted_iota(jnp.int32, (h1_dim, tm), 1)   # row in block
        sub = jax.lax.broadcasted_iota(jnp.int32, (h1_dim, tm), 0)    # feature
        ctr = ((gstep * tm + lane) * h1_dim + sub).astype(jnp.uint32)
        key = seed_u * jnp.uint32(0x9E3779B9) + jnp.uint32(0x85EBCA6B)
        h = ctr ^ key
        h ^= h >> 16
        h *= jnp.uint32(0x7FEB352D)
        h ^= h >> 15
        h *= jnp.uint32(0x846CA68B)
        h ^= h >> 16
        lo16 = h & jnp.uint32(0xFFFF)
        hi16 = h >> 16
        keep1 = lo16 >= thresh                                # (h1, tm)
        keep2 = hi16[:h2_dim] >= thresh                       # (h2, tm)
        keep3 = hi16[h2_dim:h2_dim + h3_dim] >= thresh        # (h3, tm)

    x = x_ref[...].astype(f32)                                # (in_dim, tm)

    # ---- Layer 1: Linear(in_dim -> h1) as VPU broadcast-FMA.  K=2 on the MXU
    #      would be <1% utilized; output is lane-packed (h1, tm). ----
    h = b1_ref[...].astype(f32)                               # (h1, 1)
    for k in range(in_dim):                                   # static unroll (in_dim == 2)
        h = h + w1_ref[:, k:k + 1].astype(f32) * x[k:k + 1, :]
    h = jnp.maximum(h, 0.0)
    if use_dropout:
        # 1/(1-p) rescale already folded into the consuming weights host-side.
        h = jnp.where(keep1, h, 0.0)

    # ---- Layers 2 & 3: MXU matmuls with the long row dim on the N/lane axis. ----
    h = jnp.dot(w2_ref[...], h, preferred_element_type=f32) + b2_ref[...]   # (h2, tm)
    h = jnp.maximum(h, 0.0)
    if use_dropout:
        h = jnp.where(keep2, h, 0.0)

    h = jnp.dot(w3_ref[...], h, preferred_element_type=f32) + b3_ref[...]   # (h3, tm)
    h = jnp.maximum(h, 0.0)
    if use_dropout:
        h = jnp.where(keep3, h, 0.0)

    # ---- Layer 4: Linear(h3 -> 1) as VPU multiply + sublane reduce (XLU slot). ----
    logits = jnp.sum(h * w4t_ref[...].astype(f32), axis=0, keepdims=True) \
        + b4_ref[...]                                         # (1, tm), lane-dense
    # Sigmoid exp rides the EUP slot — essentially free next to the VALU work.
    out_ref[...] = jax.nn.sigmoid(logits)[None].astype(out_ref.dtype)


# ----------------------------------------------------------------------------
# Wrapper: all MC samples in a single pallas_call
# ----------------------------------------------------------------------------
def mc_dropout_forward(x, params, seed, *, num_samples=1, dropout_p=0.2,
                       training=True, block_rows=1024):
    """Run `num_samples` Monte-Carlo-dropout forward passes in one pallas_call.

    x:      [N, input_dim] float32
    params: [(W1,b1),...,(W4,b4)] in torch.nn.Linear orientation: W [out, in], b [out]
    seed:   int32[1] — vary per call for fresh masks; every (sample, row,
            feature) inside one call already gets an independent mask.
    returns [num_samples, N, output_dim] float32
    """
    n, in_dim = x.shape
    (w1, b1), (w2, b2), (w3, b3), (w4, b4) = params
    h1_dim, h2_dim, h3_dim = w1.shape[0], w2.shape[0], w3.shape[0]
    out_dim = w4.shape[0]
    if out_dim != 1:
        raise NotImplementedError("output layer specialized for output_dim == 1")
    if h2_dim + h3_dim > h1_dim:
        raise NotImplementedError("mask packing assumes hidden2 + hidden3 <= hidden1")
    if not (0.0 <= dropout_p < 1.0):
        raise ValueError("dropout_p must be in [0, 1)")

    f32 = jnp.float32
    w1 = w1.astype(f32)
    w2 = w2.astype(f32)
    w3 = w3.astype(f32)
    w4 = w4.astype(f32)

    # One-time host-side constant fold: inverted-dropout 1/(1-p) rescale goes
    # into the weights of the layer that consumes each dropout output.
    if training and dropout_p > 0.0:
        scale = jnp.float32(1.0 / (1.0 - dropout_p))
        w2 = w2 * scale
        w3 = w3 * scale
        w4 = w4 * scale

    b1c = b1.astype(f32).reshape(h1_dim, 1)
    b2c = b2.astype(f32).reshape(h2_dim, 1)
    b3c = b3.astype(f32).reshape(h3_dim, 1)
    b4c = b4.astype(f32).reshape(1, 1)
    w4t = w4.T                                    # (h3, 1): column for the sublane reduce

    # Transposed, lane-dense compute layout: [features, rows].
    x_t = x.astype(f32).T                         # (in_dim, n)
    tm = _round_up(min(block_rows, _round_up(n, 128)), 128)
    m_pad = _round_up(n, tm)
    if m_pad != n:
        x_t = jnp.pad(x_t, ((0, 0), (0, m_pad - n)))
    n_blocks = m_pad // tm

    kernel = functools.partial(_mc_dropout_kernel,
                               dropout_p=float(dropout_p),
                               training=bool(training))

    def x_map(i, t, seed_ref):        # ignores sample axis -> resident x block reused
        return (0, i)

    def const_map(i, t, seed_ref):    # weights / biases VMEM-resident for all steps
        return (0, 0)

    def out_map(i, t, seed_ref):      # lane-dense (1, 1, tm) block per step
        return (t, 0, i)

    consts = (w1, b1c, w2, b2c, w3, b3c, w4t, b4c)

    out = pl.pallas_call(
        kernel,
        out_shape=jax.ShapeDtypeStruct((num_samples, 1, m_pad), f32),
        grid_spec=pltpu.PrefetchScalarGridSpec(
            num_scalar_prefetch=1,
            # Sample axis innermost: consecutive steps keep the same x block
            # index, so Pallas skips the re-DMA of x across MC samples.
            grid=(n_blocks, num_samples),
            in_specs=[pl.BlockSpec((in_dim, tm), x_map)]
                     + [pl.BlockSpec(c.shape, const_map) for c in consts],
            out_specs=pl.BlockSpec((1, 1, tm), out_map),
        ),
        compiler_params=pltpu.CompilerParams(
            # Row blocks are independent: shard that axis across TCs on v7x.
            dimension_semantics=("parallel", "arbitrary")),
    )(seed, x_t, *consts)

    # (T, 1, m_pad) -> (T, N, 1); padded columns are sliced off.
    return out[:, 0, :n, None]


# ----------------------------------------------------------------------------
# Deterministic parameter construction (synthetic, no checkpoint loading)
# ----------------------------------------------------------------------------
def make_params(key, input_dim=2, hidden_dims=(32, 16, 8), output_dim=1):
    """torch.nn.Linear-style params: W [out, in], b [out], U(-1/sqrt(fan_in), +) init."""
    dims = [input_dim] + list(hidden_dims) + [output_dim]
    params = []
    for i in range(len(dims) - 1):
        fan_in, fan_out = dims[i], dims[i + 1]
        key, kw, kb = jax.random.split(key, 3)
        bound = 1.0 / (fan_in ** 0.5)
        w = jax.random.uniform(kw, (fan_out, fan_in), jnp.float32, -bound, bound)
        b = jax.random.uniform(kb, (fan_out,), jnp.float32, -bound, bound)
        params.append((w, b))
    return params


def _reference_forward(x, params):
    """Pure-JAX eval-mode (no dropout) reference of the same MLP."""
    (w1, b1), (w2, b2), (w3, b3), (w4, b4) = params
    h = jnp.maximum(x @ w1.T + b1, 0.0)
    h = jnp.maximum(h @ w2.T + b2, 0.0)
    h = jnp.maximum(h @ w3.T + b3, 0.0)
    return jax.nn.sigmoid(h @ w4.T + b4)


# ----------------------------------------------------------------------------
# Main
# ----------------------------------------------------------------------------
if __name__ == "__main__":
    key = jax.random.PRNGKey(0)
    key, kx = jax.random.split(key)

    N, INPUT_DIM = 8, 2
    T = 64                                    # MC-dropout samples, fused in one call
    x = jax.random.normal(kx, (N, INPUT_DIM), jnp.float32)
    params = make_params(key, input_dim=INPUT_DIM,
                         hidden_dims=(32, 16, 8), output_dim=1)
    seed = jnp.array([1234], dtype=jnp.int32)

    # 1) Deterministic (eval-mode) correctness check against a pure-JAX reference.
    out_eval = mc_dropout_forward(x, params, seed, num_samples=1,
                                  dropout_p=0.2, training=False)
    out_eval = jax.block_until_ready(out_eval)
    ref = _reference_forward(x, params)
    assert out_eval.shape == (1, N, 1)
    assert bool(jnp.allclose(out_eval[0], ref, atol=2e-3, rtol=2e-3))

    # 2) Multi-row-block eval check (exercises the grid, padding and out layout).
    key, kx2 = jax.random.split(key)
    N2 = 300
    x2 = jax.random.normal(kx2, (N2, INPUT_DIM), jnp.float32)
    out2 = mc_dropout_forward(x2, params, seed, num_samples=1,
                              dropout_p=0.2, training=False, block_rows=128)
    out2 = jax.block_until_ready(out2)
    ref2 = _reference_forward(x2, params)
    assert out2.shape == (1, N2, 1)
    assert bool(jnp.allclose(out2[0], ref2, atol=2e-3, rtol=2e-3))

    # 3) All T MC samples in a single launch (training mode, stochastic masks).
    out_mc = mc_dropout_forward(x, params, seed, num_samples=T,
                                dropout_p=0.2, training=True)
    out_mc = jax.block_until_ready(out_mc)
    assert out_mc.shape == (T, N, 1)
    assert bool(jnp.all(jnp.isfinite(out_mc)))
    assert bool(jnp.all((out_mc >= 0.0) & (out_mc <= 1.0)))
    # Dropout must actually be stochastic across MC samples.
    assert bool(jnp.std(out_mc[:, 0, 0]) > 0.0)

    print("KERNEL_OK")
</pallas_src>

<mosaic_0001>
module attributes {stable_mosaic.version = 11 : i64} {
  func.func @_mc_dropout_kernel(%arg0: i32, %arg1: i32, %arg2: memref<1xi32, #tpu.memory_space<smem>>, %arg3: memref<2x128xf32, #tpu.memory_space<vmem>>, %arg4: memref<32x2xf32, #tpu.memory_space<vmem>>, %arg5: memref<32x1xf32, #tpu.memory_space<vmem>>, %arg6: memref<16x32xf32, #tpu.memory_space<vmem>>, %arg7: memref<16x1xf32, #tpu.memory_space<vmem>>, %arg8: memref<8x16xf32, #tpu.memory_space<vmem>>, %arg9: memref<8x1xf32, #tpu.memory_space<vmem>>, %arg10: memref<8x1xf32, #tpu.memory_space<vmem>>, %arg11: memref<1x1xf32, #tpu.memory_space<vmem>>, %arg12: memref<1x1x128xf32, #tpu.memory_space<vmem>>) attributes {dimension_semantics = [#tpu.dimension_semantics<parallel>, #tpu.dimension_semantics<arbitrary>], iteration_bounds = array<i64: 1, 1>, scalar_prefetch = 1 : i64, scratch_operands = 0 : i64, tpu.core_type = #tpu.core_type<tc>, window_params = [{transform_indices = @transform_0, window_bounds = array<i64: 2, 128>}, {pipeline_mode = #tpu.pipeline_mode<synchronous>, transform_indices = @transform_1, window_bounds = array<i64: 32, 2>}, {pipeline_mode = #tpu.pipeline_mode<synchronous>, transform_indices = @transform_2, window_bounds = array<i64: 32, 1>}, {pipeline_mode = #tpu.pipeline_mode<synchronous>, transform_indices = @transform_3, window_bounds = array<i64: 16, 32>}, {pipeline_mode = #tpu.pipeline_mode<synchronous>, transform_indices = @transform_4, window_bounds = array<i64: 16, 1>}, {pipeline_mode = #tpu.pipeline_mode<synchronous>, transform_indices = @transform_5, window_bounds = array<i64: 8, 16>}, {pipeline_mode = #tpu.pipeline_mode<synchronous>, transform_indices = @transform_6, window_bounds = array<i64: 8, 1>}, {pipeline_mode = #tpu.pipeline_mode<synchronous>, transform_indices = @transform_7, window_bounds = array<i64: 8, 1>}, {pipeline_mode = #tpu.pipeline_mode<synchronous>, transform_indices = @transform_8, window_bounds = array<i64: 1, 1>}, {transform_indices = @transform_9, window_bounds = array<i64: 1, 1, 128>}]} {
    %c0 = arith.constant 0 : index
    %c0_0 = arith.constant 0 : index
    %0 = vector.load %arg3[%c0, %c0_0] : memref<2x128xf32, #tpu.memory_space<vmem>>, vector<2x128xf32>
    %c0_1 = arith.constant 0 : index
    %c0_2 = arith.constant 0 : index
    %1 = vector.load %arg5[%c0_1, %c0_2] : memref<32x1xf32, #tpu.memory_space<vmem>>, vector<32x1xf32>
    %c0_3 = arith.constant 0 : index
    %c0_4 = arith.constant 0 : index
    %2 = vector.load %arg4[%c0_3, %c0_4] : memref<32x2xf32, #tpu.memory_space<vmem>>, vector<32x1xf32>
    %3 = vector.extract_strided_slice %0 {offsets = [0, 0], sizes = [1, 128], strides = [1, 1]} : vector<2x128xf32> to vector<1x128xf32>
    %4 = vector.broadcast %2 : vector<32x1xf32> to vector<32x128xf32>
    %5 = vector.broadcast %3 : vector<1x128xf32> to vector<32x128xf32>
    %6 = arith.mulf %4, %5 : vector<32x128xf32>
    %7 = vector.broadcast %1 : vector<32x1xf32> to vector<32x128xf32>
    %8 = arith.addf %7, %6 : vector<32x128xf32>
    %c0_5 = arith.constant 0 : index
    %c1 = arith.constant 1 : index
    %9 = vector.load %arg4[%c0_5, %c1] : memref<32x2xf32, #tpu.memory_space<vmem>>, vector<32x1xf32>
    %10 = vector.extract_strided_slice %0 {offsets = [1, 0], sizes = [1, 128], strides = [1, 1]} : vector<2x128xf32> to vector<1x128xf32>
    %11 = vector.broadcast %9 : vector<32x1xf32> to vector<32x128xf32>
    %12 = vector.broadcast %10 : vector<1x128xf32> to vector<32x128xf32>
    %13 = arith.mulf %11, %12 : vector<32x128xf32>
    %14 = arith.addf %8, %13 : vector<32x128xf32>
    %cst = arith.constant 0.000000e+00 : f32
    %15 = vector.broadcast %cst : f32 to vector<32x128xf32>
    %16 = arith.maximumf %14, %15 : vector<32x128xf32>
    %c0_6 = arith.constant 0 : index
    %c0_7 = arith.constant 0 : index
    %17 = vector.load %arg6[%c0_6, %c0_7] : memref<16x32xf32, #tpu.memory_space<vmem>>, vector<16x32xf32>
    %cst_8 = arith.constant dense<0.000000e+00> : vector<16x128xf32>
    %18 = tpu.matmul %17, %16, %cst_8 {dimension_numbers = #tpu.dot_dimension_numbers<[1], [0], [0], [1], [0, 0, 1, 1], [], []>} : vector<16x32xf32>, vector<32x128xf32>, vector<16x128xf32> -> vector<16x128xf32>
    %c0_9 = arith.constant 0 : index
    %c0_10 = arith.constant 0 : index
    %19 = vector.load %arg7[%c0_9, %c0_10] : memref<16x1xf32, #tpu.memory_space<vmem>>, vector<16x1xf32>
    %20 = vector.broadcast %19 : vector<16x1xf32> to vector<16x128xf32>
    %21 = arith.addf %18, %20 : vector<16x128xf32>
    %cst_11 = arith.constant 0.000000e+00 : f32
    %22 = vector.broadcast %cst_11 : f32 to vector<16x128xf32>
    %23 = arith.maximumf %21, %22 : vector<16x128xf32>
    %c0_12 = arith.constant 0 : index
    %c0_13 = arith.constant 0 : index
    %24 = vector.load %arg8[%c0_12, %c0_13] : memref<8x16xf32, #tpu.memory_space<vmem>>, vector<8x16xf32>
    %cst_14 = arith.constant dense<0.000000e+00> : vector<8x128xf32>
    %25 = tpu.matmul %24, %23, %cst_14 {dimension_numbers = #tpu.dot_dimension_numbers<[1], [0], [0], [1], [0, 0, 1, 1], [], []>} : vector<8x16xf32>, vector<16x128xf32>, vector<8x128xf32> -> vector<8x128xf32>
    %c0_15 = arith.constant 0 : index
    %c0_16 = arith.constant 0 : index
    %26 = vector.load %arg9[%c0_15, %c0_16] : memref<8x1xf32, #tpu.memory_space<vmem>>, vector<8x1xf32>
    %27 = vector.broadcast %26 : vector<8x1xf32> to vector<8x128xf32>
    %28 = arith.addf %25, %27 : vector<8x128xf32>
    %cst_17 = arith.constant 0.000000e+00 : f32
    %29 = vector.broadcast %cst_17 : f32 to vector<8x128xf32>
    %30 = arith.maximumf %28, %29 : vector<8x128xf32>
    %c0_18 = arith.constant 0 : index
    %c0_19 = arith.constant 0 : index
    %31 = vector.load %arg10[%c0_18, %c0_19] : memref<8x1xf32, #tpu.memory_space<vmem>>, vector<8x1xf32>
    %32 = vector.broadcast %31 : vector<8x1xf32> to vector<8x128xf32>
    %33 = arith.mulf %30, %32 : vector<8x128xf32>
    %cst_20 = arith.constant dense<0.000000e+00> : vector<128xf32>
    %34 = vector.multi_reduction <add>, %33, %cst_20 [0] : vector<8x128xf32> to vector<128xf32>
    %35 = vector.shape_cast %34 : vector<128xf32> to vector<1x128xf32>
    %c0_21 = arith.constant 0 : index
    %c0_22 = arith.constant 0 : index
    %36 = vector.load %arg11[%c0_21, %c0_22] : memref<1x1xf32, #tpu.memory_space<vmem>>, vector<1x1xf32>
    %37 = vector.broadcast %36 : vector<1x1xf32> to vector<1x128xf32>
    %38 = arith.addf %35, %37 : vector<1x128xf32>
    %39 = arith.negf %38 : vector<1x128xf32>
    %40 = math.exp %39 : vector<1x128xf32>
    %cst_23 = arith.constant 1.000000e+00 : f32
    %41 = vector.broadcast %cst_23 : f32 to vector<1x128xf32>
    %42 = arith.addf %41, %40 : vector<1x128xf32>
    %43 = arith.divf %41, %42 : vector<1x128xf32>
    %44 = vector.shape_cast %43 : vector<1x128xf32> to vector<1x1x128xf32>
    %c0_24 = arith.constant 0 : index
    %c0_25 = arith.constant 0 : index
    %c0_26 = arith.constant 0 : index
    %45 = vector.load %arg12[%c0_24, %c0_25, %c0_26] : memref<1x1x128xf32, #tpu.memory_space<vmem>>, vector<1x1x128xf32>
    tpu.vector_store %arg12[%c0_24, %c0_25, %c0_26], %44 {strides = array<i32>} : memref<1x1x128xf32, #tpu.memory_space<vmem>>, vector<1x1x128xf32>,
    return
  }
  func.func @transform_0(%arg0: i32, %arg1: i32, %arg2: memref<1xi32, #tpu.memory_space<smem>>) -> (i32, i32) {
    %c0_i32 = arith.constant 0 : i32
    %c0_i32_0 = arith.constant 0 : i32
    return %c0_i32, %arg0 : i32, i32
  }
  func.func @transform_1(%arg0: i32, %arg1: i32, %arg2: memref<1xi32, #tpu.memory_space<smem>>) -> (i32, i32) {
    %c0_i32 = arith.constant 0 : i32
    %c0_i32_0 = arith.constant 0 : i32
    %c0_i32_1 = arith.constant 0 : i32
    return %c0_i32, %c0_i32_0 : i32, i32
  }
  func.func @transform_2(%arg0: i32, %arg1: i32, %arg2: memref<1xi32, #tpu.memory_space<smem>>) -> (i32, i32) {
    %c0_i32 = arith.constant 0 : i32
    %c0_i32_0 = arith.constant 0 : i32
    %c0_i32_1 = arith.constant 0 : i32
    return %c0_i32, %c0_i32_0 : i32, i32
  }
  func.func @transform_3(%arg0: i32, %arg1: i32, %arg2: memref<1xi32, #tpu.memory_space<smem>>) -> (i32, i32) {
    %c0_i32 = arith.constant 0 : i32
    %c0_i32_0 = arith.constant 0 : i32
    %c0_i32_1 = arith.constant 0 : i32
    return %c0_i32, %c0_i32_0 : i32, i32
  }
  func.func @transform_4(%arg0: i32, %arg1: i32, %arg2: memref<1xi32, #tpu.memory_space<smem>>) -> (i32, i32) {
    %c0_i32 = arith.constant 0 : i32
    %c0_i32_0 = arith.constant 0 : i32
    %c0_i32_1 = arith.constant 0 : i32
    return %c0_i32, %c0_i32_0 : i32, i32
  }
  func.func @transform_5(%arg0: i32, %arg1: i32, %arg2: memref<1xi32, #tpu.memory_space<smem>>) -> (i32, i32) {
    %c0_i32 = arith.constant 0 : i32
    %c0_i32_0 = arith.constant 0 : i32
    %c0_i32_1 = arith.constant 0 : i32
    return %c0_i32, %c0_i32_0 : i32, i32
  }
  func.func @transform_6(%arg0: i32, %arg1: i32, %arg2: memref<1xi32, #tpu.memory_space<smem>>) -> (i32, i32) {
    %c0_i32 = arith.constant 0 : i32
    %c0_i32_0 = arith.constant 0 : i32
    %c0_i32_1 = arith.constant 0 : i32
    return %c0_i32, %c0_i32_0 : i32, i32
  }
  func.func @transform_7(%arg0: i32, %arg1: i32, %arg2: memref<1xi32, #tpu.memory_space<smem>>) -> (i32, i32) {
    %c0_i32 = arith.constant 0 : i32
    %c0_i32_0 = arith.constant 0 : i32
    %c0_i32_1 = arith.constant 0 : i32
    return %c0_i32, %c0_i32_0 : i32, i32
  }
  func.func @transform_8(%arg0: i32, %arg1: i32, %arg2: memref<1xi32, #tpu.memory_space<smem>>) -> (i32, i32) {
    %c0_i32 = arith.constant 0 : i32
    %c0_i32_0 = arith.constant 0 : i32
    %c0_i32_1 = arith.constant 0 : i32
    return %c0_i32, %c0_i32_0 : i32, i32
  }
  func.func @transform_9(%arg0: i32, %arg1: i32, %arg2: memref<1xi32, #tpu.memory_space<smem>>) -> (i32, i32, i32) {
    %c0_i32 = arith.constant 0 : i32
    %c0_i32_0 = arith.constant 0 : i32
    return %arg1, %c0_i32, %arg0 : i32, i32, i32
  }
}

</mosaic_0001>

<llo_original>
// kernel: tpu_custom_call.1
$region0: #{tpu_custom_call.1}
  #allocation0 [shape = 'u32[]', space=smem, size = 0x4, offset = 0x4, fixed_abs, tag = 'smem constant byte address 0x4 - core index']
  #allocation1 [shape = 'u32[144,128]{1,0:T(1,128)}', space=vmem, size = 0x12000, scoped, tag = 'internal scratch']
  #allocation2 [shape = 's32[1]{0}', space=sflag, size = 0x4, scoped, tag = 'scoped memory for tpu_custom_call.1']
  #allocation3 [shape = 's32[1]{0:T(128)S(6)}', space=smem, size = 0x200, scoped, tag = 'prefetched SMEM operand 0']
  #allocation4 [shape = 'f32[1,1]{1,0:T(1,128)S(1)}', space=vmem, size = 0x200, scoped, tag = 'scoped memory for tpu_custom_call.1']
  %s0 = inlined_call_operand.<no memory space> [shape: s32[1], index: 0, kind: input, shape index: {}]
  %s1 = inlined_call_operand.vmem [shape: f32[2,128], index: 1, kind: input, shape index: {}]
  %s2 = inlined_call_operand.vmem [shape: f32[32,2], index: 2, kind: input, shape index: {}]
  %s3 = inlined_call_operand.vmem [shape: f32[32,1], index: 3, kind: input, shape index: {}]
  %s4 = inlined_call_operand.vmem [shape: f32[16,32], index: 4, kind: input, shape index: {}]
  %s5 = inlined_call_operand.vmem [shape: f32[16,1], index: 5, kind: input, shape index: {}]
  %s6 = inlined_call_operand.vmem [shape: f32[8,16], index: 6, kind: input, shape index: {}]
  %s7 = inlined_call_operand.vmem [shape: f32[8,1], index: 7, kind: input, shape index: {}]
  %s8 = inlined_call_operand.vmem [shape: f32[8,1], index: 8, kind: input, shape index: {}]
  %s9 = inlined_call_operand.<no memory space> [shape: f32[1,1], index: 9, kind: input, shape index: {}]
  %s10 = inlined_call_operand.hbm [shape: f32[1,1,128], index: 10, kind: output, shape index: {}]
  %s11 = sld [smem:[#allocation0]]
  $region46: #{tpu_custom_call.1} parent=0
    _
  %s13 = ssub.s32 1, %s11
  %s14 = scalar_select 0, %s13, %s11
  %15 = sst [smem:[#allocation3]] %s0
  %v16 = vstv %s9
  %17 = vst [vmem:[#allocation4] sm:$0x1] %v16
  $region1: #{tpu_custom_call.1} parent=0
    #allocation5 [shape = 'u8[512]{0}', space=vmem, size = 0x400, scoped, tag = 'output window, operand 0, single buffered']
    #allocation6 [shape = 's32[1]{0}', space=sflag, size = 0x4, scoped, tag = 'scoped memory for tpu_custom_call.1']
    %18 = vsyncpa [#allocation6], 0
    // Predicated region
    $region2: #{tpu_custom_call.1} parent=1 // pred_check
      _
    $region3: #{tpu_custom_call.1} parent=1 // pred_check_branch
      %20 = sbr.rel (0) target = $region5
    $region4: #{tpu_custom_call.1} parent=1 // pred_region
      _
    $region5: #{tpu_custom_call.1} parent=1 // pred_fallthru
      _
    // Predicated region
    $region6: #{tpu_custom_call.1} parent=1 // pred_check
      _
    $region7: #{tpu_custom_call.1} parent=1 // pred_check_branch
      %22 = sbr.rel (0) target = $region9
    $region8: #{tpu_custom_call.1} parent=1 // pred_region
      _
    $region9: #{tpu_custom_call.1} parent=1 // pred_fallthru
      _
    // Predicated region
    $region10: #{tpu_custom_call.1} parent=1 // pred_check
      _
    $region11: #{tpu_custom_call.1} parent=1 // pred_check_branch
      %24 = sbr.rel (0) target = $region13
    $region12: #{tpu_custom_call.1} parent=1 // pred_region
      _
    $region13: #{tpu_custom_call.1} parent=1 // pred_fallthru
      _
    // Predicated region
    $region14: #{tpu_custom_call.1} parent=1 // pred_check
      _
    $region15: #{tpu_custom_call.1} parent=1 // pred_check_branch
      %26 = sbr.rel (0) target = $region17
    $region16: #{tpu_custom_call.1} parent=1 // pred_region
      _
    $region17: #{tpu_custom_call.1} parent=1 // pred_fallthru
      _
    // Predicated region
    $region18: #{tpu_custom_call.1} parent=1 // pred_check
      _
    $region19: #{tpu_custom_call.1} parent=1 // pred_check_branch
      %28 = sbr.rel (0) target = $region21
    $region20: #{tpu_custom_call.1} parent=1 // pred_region
      _
    $region21: #{tpu_custom_call.1} parent=1 // pred_fallthru
      _
    // Predicated region
    $region22: #{tpu_custom_call.1} parent=1 // pred_check
      _
    $region23: #{tpu_custom_call.1} parent=1 // pred_check_branch
      %30 = sbr.rel (0) target = $region25
    $region24: #{tpu_custom_call.1} parent=1 // pred_region
      _
    $region25: #{tpu_custom_call.1} parent=1 // pred_fallthru
      _
    // Predicated region
    $region26: #{tpu_custom_call.1} parent=1 // pred_check
      _
    $region27: #{tpu_custom_call.1} parent=1 // pred_check_branch
      %32 = sbr.rel (0) target = $region29
    $region28: #{tpu_custom_call.1} parent=1 // pred_region
      _
    $region29: #{tpu_custom_call.1} parent=1 // pred_fallthru
      _
    // Predicated region
    $region30: #{tpu_custom_call.1} parent=1 // pred_check
      _
    $region31: #{tpu_custom_call.1} parent=1 // pred_check_branch
      %34 = sbr.rel (0) target = $region33
    $region32: #{tpu_custom_call.1} parent=1 // pred_region
      _
    $region33: #{tpu_custom_call.1} parent=1 // pred_fallthru
      _
    // Predicated region
    $region34: #{tpu_custom_call.1} parent=1 // pred_check
      _
    $region35: #{tpu_custom_call.1} parent=1 // pred_check_branch
      %36 = sbr.rel (0) target = $region37
    $region36: #{tpu_custom_call.1} parent=1 // pred_region
      _
    $region37: #{tpu_custom_call.1} parent=1 // pred_fallthru
      _
    %v37 = vld [vmem:[%s1] sm:$0x3]
    %v38 = vld [vmem:[%s3] sm:$0xff]
    %v39 = vld [vmem:[%s3 + $0x8] sm:$0xff]
    %v40 = vld [vmem:[%s3 + $0x10] sm:$0xff]
    %v41 = vld [vmem:[%s3 + $0x18] sm:$0xff]
    %v42 = vld [vmem:[%s2] sm:$0xff]
    %v43 = vld [vmem:[%s2 + $0x8] sm:$0xff]
    %v44 = vld [vmem:[%s2 + $0x10] sm:$0xff]
    %v45 = vld [vmem:[%s2 + $0x18] sm:$0xff]
    %47 = vset.pattern.permute.xlu0 0
    %48 = vperm.xlu0 %47, %v42
    %v49 = vpop.permute.xlu0 %48
    %52 = vset.pattern.permute.xlu0 0
    %53 = vperm.xlu0 %52, %v43
    %v54 = vpop.permute.xlu0 %53
    %57 = vset.pattern.permute.xlu0 0
    %58 = vperm.xlu0 %57, %v44
    %v59 = vpop.permute.xlu0 %58
    %62 = vset.pattern.permute.xlu0 0
    %63 = vperm.xlu0 %62, %v45
    %v64 = vpop.permute.xlu0 %63
    %v66 = vlaneseq
    %v67 = vshrl.u32 %v66, 7
    %v68 = vsub.s32 0, %v67
    %v69 = vrot.slane %v37, %v68
    %v70 = vmul.f32 %v49, %v69
    %v71 = vmul.f32 %v54, %v69
    %v72 = vmul.f32 %v59, %v69
    %v73 = vmul.f32 %v64, %v69
    %75 = vset.pattern.permute.xlu0 0
    %76 = vperm.xlu0 %75, %v38
    %v77 = vpop.permute.xlu0 %76
    %80 = vset.pattern.permute.xlu0 0
    %81 = vperm.xlu0 %80, %v39
    %v82 = vpop.permute.xlu0 %81
    %85 = vset.pattern.permute.xlu0 0
    %86 = vperm.xlu0 %85, %v40
    %v87 = vpop.permute.xlu0 %86
    %90 = vset.pattern.permute.xlu0 0
    %91 = vperm.xlu0 %90, %v41
    %v92 = vpop.permute.xlu0 %91
    %v94 = vadd.f32 %v77, %v70
    %v95 = vadd.f32 %v82, %v71
    %v96 = vadd.f32 %v87, %v72
    %v97 = vadd.f32 %v92, %v73
    %98 = vset.pattern.permute.xlu0 1
    %99 = vperm.xlu0 %98, %v42
    %v100 = vpop.permute.xlu0 %99
    %102 = vset.pattern.permute.xlu0 1
    %103 = vperm.xlu0 %102, %v43
    %v104 = vpop.permute.xlu0 %103
    %106 = vset.pattern.permute.xlu0 1
    %107 = vperm.xlu0 %106, %v44
    %v108 = vpop.permute.xlu0 %107
    %110 = vset.pattern.permute.xlu0 1
    %111 = vperm.xlu0 %110, %v45
    %v112 = vpop.permute.xlu0 %111
    %v114 = vlaneseq
    %v115 = vshrl.u32 %v114, 7
    %v116 = vsub.s32 1, %v115
    %v117 = vrot.slane %v37, %v116
    %v118 = vmul.f32 %v100, %v117
    %v119 = vmul.f32 %v104, %v117
    %v120 = vmul.f32 %v108, %v117
    %v121 = vmul.f32 %v112, %v117
    %v122 = vadd.f32 %v94, %v118
    %v123 = vadd.f32 %v95, %v119
    %v124 = vadd.f32 %v96, %v120
    %v125 = vadd.f32 %v97, %v121
    %v126 = vmax.f32 %v122, 0.0
    %v127 = vmax.f32 %v123, 0.0
    %v128 = vmax.f32 %v124, 0.0
    %v129 = vmax.f32 %v125, 0.0
    %v130 = vld [vmem:[%s4] sm:$0xff]
    %v131 = vld [vmem:[%s4 + $0x8] sm:$0xff]
    %v132 = vld [vmem:[%s5] sm:$0xff]
    %v133 = vld [vmem:[%s5 + $0x8] sm:$0xff]
    %135 = vset.pattern.permute.xlu0 0
    %136 = vperm.xlu0 %135, %v132
    %v137 = vpop.permute.xlu0 %136
    %140 = vset.pattern.permute.xlu0 0
    %141 = vperm.xlu0 %140, %v133
    %v142 = vpop.permute.xlu0 %141
    %vm144 = vcmask 261120
    %v146 = vsel %vm144, %v130, 0
    %v149 = vsel %vm144, %v131, 0
    %151 = vmatprep.subr.mxu0 0.0
    %152 = vmatpush1.msra.mxu0 0.0
    %153 = vmatprep.subr.mxu0 0.0
    %154 = vmatpush1.msra.mxu0 0.0
    %155 = vmatprep.subr.mxu0 0.0
    %156 = vmatpush1.msra.mxu0 0.0
    %157 = vmatprep.subr.mxu0 0.0
    %158 = vmatpush1.msra.mxu0 0.0
    %159 = vmatprep.subr.mxu0 0.0
    %160 = vmatpush1.msra.mxu0 0.0
    %161 = vmatprep.subr.mxu0 0.0
    %162 = vmatpush1.msra.mxu0 0.0
    %163 = vmatprep.subr.mxu0 0.0
    %164 = vmatpush1.msra.mxu0 0.0
    %165 = vmatprep.subr.mxu0 0.0
    %166 = vmatpush1.msra.mxu0 0.0
    %167 = vmatprep.subr.mxu0 0.0
    %168 = vmatpush1.msra.mxu0 0.0
    %169 = vmatprep.subr.mxu0 0.0
    %170 = vmatpush1.msra.mxu0 0.0
    %171 = vmatprep.subr.mxu0 0.0
    %172 = vmatpush1.msra.mxu0 0.0
    %173 = vmatprep.subr.mxu0 0.0
    %174 = vmatpush1.msra.mxu0 0.0
    %175 = vmatprep.subr.mxu0 0.0
    %176 = vmatpush1.msra.mxu0 %v129
    %177 = vmatprep.subr.mxu0 0.0
    %178 = vmatpush1.msra.mxu0 %v128
    %179 = vmatprep.subr.mxu0 0.0
    %180 = vmatpush1.msra.mxu0 %v127
    %181 = vmatprep.subr.mxu0 0.0
    %182 = vmatpush1.msra.mxu0 %v126
    %183 = vmatprep.subr.mxu0 0.0
    %184 = vmatpush2.msra.mxu0 0.0
    %185 = vmatprep.subr.mxu0 0.0
    %186 = vmatpush2.msra.mxu0 0.0
    %187 = vmatprep.subr.mxu0 0.0
    %188 = vmatpush2.msra.mxu0 0.0
    %189 = vmatprep.subr.mxu0 0.0
    %190 = vmatpush2.msra.mxu0 0.0
    %191 = vmatprep.subr.mxu0 0.0
    %192 = vmatpush2.msra.mxu0 0.0
    %193 = vmatprep.subr.mxu0 0.0
    %194 = vmatpush2.msra.mxu0 0.0
    %195 = vmatprep.subr.mxu0 0.0
    %196 = vmatpush2.msra.mxu0 0.0
    %197 = vmatprep.subr.mxu0 0.0
    %198 = vmatpush2.msra.mxu0 0.0
    %199 = vmatprep.subr.mxu0 0.0
    %200 = vmatpush2.msra.mxu0 0.0
    %201 = vmatprep.subr.mxu0 0.0
    %202 = vmatpush2.msra.mxu0 0.0
    %203 = vmatprep.subr.mxu0 0.0
    %204 = vmatpush2.msra.mxu0 0.0
    %205 = vmatprep.subr.mxu0 0.0
    %206 = vmatpush2.msra.mxu0 0.0
    %207 = vmatprep.subr.mxu0 0.0
    %208 = vmatpush2.msra.mxu0 0.0
    %209 = vmatprep.subr.mxu0 0.0
    %210 = vmatpush2.msra.mxu0 0.0
    %211 = vmatprep.subr.mxu0 0.0
    %212 = vmatpush2.msra.mxu0 0.0
    %213 = vmatprep.subr.mxu0 0.0
    %214 = vmatpush2.msra.mxu0 0.0
    %215 = vmatprep.mubr.f32.mxu0 0.0
    %216 = vmatmul.mubr.f32.gmra.mxu0 %v146
    %v217 = vpop.f32.mrf.mxu0
    %v218 = vadd.f32 %v137, %v217
    %v219 = vpop.f32.mrf.mxu0
    %220 = vmatprep.mubr.f32.mxu0 0.0
    %221 = vmatmul.mubr.f32.gmra.mxu0 %v149
    %v222 = vpop.f32.mrf.mxu0
    %v223 = vadd.f32 %v142, %v222
    %v224 = vpop.f32.mrf.mxu0
    %225 = vdwg.mxu0
    %v226 = vmax.f32 %v218, 0.0
    %v227 = vmax.f32 %v223, 0.0
    %v228 = vld [vmem:[%s6] sm:$0xff]
    %v229 = vld [vmem:[%s7] sm:$0xff]
    %231 = vset.pattern.permute.xlu0 0
    %232 = vperm.xlu0 %231, %v229
    %v233 = vpop.permute.xlu0 %232
    %vm235 = vcmask 130048
    %v237 = vsel %vm235, %v228, 0
    %239 = vmatprep.subr.mxu0 0.0
    %240 = vmatpush1.msra.mxu0 0.0
    %241 = vmatprep.subr.mxu0 0.0
    %242 = vmatpush1.msra.mxu0 0.0
    %243 = vmatprep.subr.mxu0 0.0
    %244 = vmatpush1.msra.mxu0 0.0
    %245 = vmatprep.subr.mxu0 0.0
    %246 = vmatpush1.msra.mxu0 0.0
    %247 = vmatprep.subr.mxu0 0.0
    %248 = vmatpush1.msra.mxu0 0.0
    %249 = vmatprep.subr.mxu0 0.0
    %250 = vmatpush1.msra.mxu0 0.0
    %251 = vmatprep.subr.mxu0 0.0
    %252 = vmatpush1.msra.mxu0 0.0
    %253 = vmatprep.subr.mxu0 0.0
    %254 = vmatpush1.msra.mxu0 0.0
    %255 = vmatprep.subr.mxu0 0.0
    %256 = vmatpush1.msra.mxu0 0.0
    %257 = vmatprep.subr.mxu0 0.0
    %258 = vmatpush1.msra.mxu0 0.0
    %259 = vmatprep.subr.mxu0 0.0
    %260 = vmatpush1.msra.mxu0 0.0
    %261 = vmatprep.subr.mxu0 0.0
    %262 = vmatpush1.msra.mxu0 0.0
    %263 = vmatprep.subr.mxu0 0.0
    %264 = vmatpush1.msra.mxu0 0.0
    %265 = vmatprep.subr.mxu0 0.0
    %266 = vmatpush1.msra.mxu0 0.0
    %267 = vmatprep.subr.mxu0 0.0
    %268 = vmatpush1.msra.mxu0 %v227
    %269 = vmatprep.subr.mxu0 0.0
    %270 = vmatpush1.msra.mxu0 %v226
    %271 = vmatprep.subr.mxu0 0.0
    %272 = vmatpush2.msra.mxu0 0.0
    %273 = vmatprep.subr.mxu0 0.0
    %274 = vmatpush2.msra.mxu0 0.0
    %275 = vmatprep.subr.mxu0 0.0
    %276 = vmatpush2.msra.mxu0 0.0
    %277 = vmatprep.subr.mxu0 0.0
    %278 = vmatpush2.msra.mxu0 0.0
    %279 = vmatprep.subr.mxu0 0.0
    %280 = vmatpush2.msra.mxu0 0.0
    %281 = vmatprep.subr.mxu0 0.0
    %282 = vmatpush2.msra.mxu0 0.0
    %283 = vmatprep.subr.mxu0 0.0
    %284 = vmatpush2.msra.mxu0 0.0
    %285 = vmatprep.subr.mxu0 0.0
    %286 = vmatpush2.msra.mxu0 0.0
    %287 = vmatprep.subr.mxu0 0.0
    %288 = vmatpush2.msra.mxu0 0.0
    %289 = vmatprep.subr.mxu0 0.0
    %290 = vmatpush2.msra.mxu0 0.0
    %291 = vmatprep.subr.mxu0 0.0
    %292 = vmatpush2.msra.mxu0 0.0
    %293 = vmatprep.subr.mxu0 0.0
    %294 = vmatpush2.msra.mxu0 0.0
    %295 = vmatprep.subr.mxu0 0.0
    %296 = vmatpush2.msra.mxu0 0.0
    %297 = vmatprep.subr.mxu0 0.0
    %298 = vmatpush2.msra.mxu0 0.0
    %299 = vmatprep.subr.mxu0 0.0
    %300 = vmatpush2.msra.mxu0 0.0
    %301 = vmatprep.subr.mxu0 0.0
    %302 = vmatpush2.msra.mxu0 0.0
    %303 = vmatprep.mubr.f32.mxu0 0.0
    %304 = vmatmul.mubr.f32.gmra.mxu0 %v237
    %v305 = vpop.f32.mrf.mxu0
    %v306 = vadd.f32 %v233, %v305
    %v307 = vpop.f32.mrf.mxu0
    %308 = vdwg.mxu0
    %v309 = vmax.f32 %v306, 0.0
    %v310 = vld [vmem:[%s8] sm:$0xff]
    %312 = vset.pattern.permute.xlu0 0
    %313 = vperm.xlu0 %312, %v310
    %v314 = vpop.permute.xlu0 %313
    %v316 = vmul.f32 %v309, %v314
    %v317 = vrot.slane %v316, 4
    %v318 = vadd.f32 %v316, %v317
    %v319 = vrot.slane %v318, 2
    %v320 = vadd.f32 %v318, %v319
    %v321 = vrot.slane %v320, 1
    %v322 = vadd.f32 %v320, %v321
    %v323 = vld [vmem:[#allocation4] sm:$0x1]
    %325 = vset.pattern.permute.xlu0 0
    %326 = vperm.xlu0 %325, %v323
    %v327 = vpop.permute.xlu0 %326
    %v329 = vlaneseq
    %v330 = vshrl.u32 %v329, 7
    %v331 = vsub.s32 0, %v330
    %v332 = vrot.slane %v327, %v331
    %v333 = vadd.f32 %v322, %v332
    %v334 = vxor.u32 %v333, 2147483648
    %v335 = vmul.f32 %v334, 1.442695
    %v336 = vpow.pop %v335
    %v337 = vadd.f32 %v336, 1.0
    %v338 = vrcp.pop %v337
    %v339 = vmul.f32 1.0, %v338
    %340 = vst [vmem:[#allocation5] sm:$0x1] %v339
    // Predicated region
    $region38: #{tpu_custom_call.1} parent=1 // pred_check
      _
    $region39: #{tpu_custom_call.1} parent=1 // pred_check_branch
      %342 = sbr.rel (0) target = $region41
    $region40: #{tpu_custom_call.1} parent=1 // pred_region
      %s344 = ssub.s32 16, 16
      %345 = vsyncadd [#allocation6], %s344
      %s347 = sshll.u32 [#allocation5], 4
      %s348 = int_to_ptr.vmem [resolvable:$true] %s347
      %350 = dma.vmem_to_hbm [thread:$0]  %s348, 16, %s10, [#allocation6]
    $region41: #{tpu_custom_call.1} parent=1 // pred_fallthru
      _
    // Predicated region
    $region42: #{tpu_custom_call.1} parent=1 // pred_check
      _
    $region43: #{tpu_custom_call.1} parent=1 // pred_check_branch
      %352 = sbr.rel (0) target = $region45
    $region44: #{tpu_custom_call.1} parent=1 // pred_region
      %353 = dma.done [#allocation6], 16
    $region45: #{tpu_custom_call.1} parent=1 // pred_fallthru
      _
    %354 = vsyncpa [#allocation6], 1

</llo_original>
